<compile_context>
chip_gen: v7x
topology: tpu7x:2x2x1
jax: 0.10.0
libtpu: 0.0.40
codegen_flags: <defaults>
</compile_context>

<pallas_src>
import jax
import jax.numpy as jnp
from jax.experimental import pallas as pl
from jax.experimental.pallas import tpu as pltpu

_LANE = 128          # TPU lane width
_TILE_N_MAX = 16384  # (2,16384) f32 in = 128 KiB, (1,16384) f32 out = 64 KiB;
                     # x2 double-buffer ~0.4 MiB -> fits scoped VMEM with large
                     # headroom on v5e / v6e / v7x (incl. 64 MiB v7x VMEM).


def _affine_kernel(coef_ref, x_ref, o_ref):
    # coef_ref : SMEM f32[3] = [w0, w1, b]   (collapsed 2->1 affine map)
    # x_ref    : VMEM f32[2, TILE_N]         (features on sublanes, batch on lanes)
    # o_ref    : VMEM f32[1, TILE_N]         (lane-dense output, unmasked stores)
    w0 = coef_ref[0]
    w1 = coef_ref[1]
    b = coef_ref[2]
    # Pure VPU broadcast-FMA; no MXU (K=2, N_out=1 would waste >99% of it).
    o_ref[...] = (x_ref[0:1, :] * w0 + x_ref[1:2, :] * w1 + b).astype(o_ref.dtype)


def circle_model_v1(x, params):
    """Forward pass of CircleModelV1 via a single pallas_call.

    x: (N, 2) float32.  Returns (N, 1) float32, matching
    ((x @ w1 + b1) @ w2 + b2) @ w3 + b3 up to fp reassociation.
    """
    w1, b1, w2, b2, w3, b3 = params

    # Algebraic collapse of the three Linear layers (no nonlinearity between).
    w_eff = w1 @ w2 @ w3                       # (2, 1)
    b_eff = (b1 @ w2 + b2) @ w3 + b3           # (1, 1)
    coef = jnp.concatenate(
        [w_eff.reshape(-1), b_eff.reshape(-1)]).astype(jnp.float32)  # (3,)

    n = x.shape[0]

    # Batch rides the 128-lane axis: x -> (2, N), output -> (1, N).
    xt = x.T.astype(jnp.float32)               # (2, N)

    # Lane-aligned padding + tile choice (keeps every block (8,128)-legal:
    # sublane dims 2 / 1 equal the full array dims, lane dim is a x128 multiple).
    n_lane = ((n + _LANE - 1) // _LANE) * _LANE
    tile_n = min(_TILE_N_MAX, n_lane)
    num_tiles = (n_lane + tile_n - 1) // tile_n
    n_pad = num_tiles * tile_n
    if n_pad != n:
        xt = jnp.pad(xt, ((0, 0), (0, n_pad - n)))

    out = pl.pallas_call(
        _affine_kernel,
        out_shape=jax.ShapeDtypeStruct((1, n_pad), jnp.float32),
        grid=(num_tiles,),
        in_specs=[
            # The 3 collapsed scalars live in SMEM: no VMEM tile, no vreg load,
            # removes 6 of 7 per-step input DMAs of the original kernel.
            pl.BlockSpec(memory_space=pltpu.MemorySpace.SMEM),
            pl.BlockSpec((2, tile_n), lambda i: (0, i)),
        ],
        out_specs=pl.BlockSpec((1, tile_n), lambda i: (0, i)),
        compiler_params=pltpu.CompilerParams(
            # Batch tiles are independent -> shard grid across both TCs on v7x.
            dimension_semantics=("parallel",),
        ),
    )(coef, xt)

    return out[:, :n].T                        # (N, 1)


def init_params(key):
    """Deterministic init mimicking PyTorch nn.Linear default
    (uniform(-1/sqrt(fan_in), 1/sqrt(fan_in))). Weights stored as (in, out)."""
    def linear(key, fan_in, fan_out):
        kw, kb = jax.random.split(key)
        bound = 1.0 / jnp.sqrt(fan_in)
        w = jax.random.uniform(kw, (fan_in, fan_out), jnp.float32, -bound, bound)
        b = jax.random.uniform(kb, (1, fan_out), jnp.float32, -bound, bound)
        return w, b

    k1, k2, k3 = jax.random.split(key, 3)
    w1, b1 = linear(k1, 2, 10)   # layer1: Linear(2, 10)
    w2, b2 = linear(k2, 10, 10)  # layer2: Linear(10, 10)
    w3, b3 = linear(k3, 10, 1)   # layer3: Linear(10, 1)
    return (w1, b1, w2, b2, w3, b3)


if __name__ == "__main__":
    key = jax.random.PRNGKey(0)
    k_params, k_x = jax.random.split(key)

    params = init_params(k_params)
    # small batch of 2-D points, consistent with in_features=2
    x = jax.random.normal(k_x, (8, 2), dtype=jnp.float32)

    out = circle_model_v1(x, params)
    out = jax.block_until_ready(out)

    # reference check in plain JAX (un-collapsed 3-layer form)
    w1, b1, w2, b2, w3, b3 = params
    ref = ((x @ w1 + b1) @ w2 + b2) @ w3 + b3
    assert out.shape == (8, 1)
    assert jnp.allclose(out, ref, atol=1e-5, rtol=1e-5)

    print("KERNEL_OK")
</pallas_src>

<mosaic_0001>
module attributes {stable_mosaic.version = 11 : i64} {
  func.func @_affine_kernel(%arg0: i32, %arg1: memref<3xf32, #tpu.memory_space<smem>>, %arg2: memref<2x128xf32, #tpu.memory_space<vmem>>, %arg3: memref<1x128xf32, #tpu.memory_space<vmem>>) attributes {dimension_semantics = [#tpu.dimension_semantics<parallel>], iteration_bounds = array<i64: 1>, scalar_prefetch = 0 : i64, scratch_operands = 0 : i64, tpu.core_type = #tpu.core_type<tc>, window_params = [{transform_indices = @transform_0, window_bounds = array<i64: 3>}, {transform_indices = @transform_1, window_bounds = array<i64: 2, 128>}, {transform_indices = @transform_2, window_bounds = array<i64: 1, 128>}]} {
    %c0 = arith.constant 0 : index
    %0 = memref.load %arg1[%c0] : memref<3xf32, #tpu.memory_space<smem>>
    %c1 = arith.constant 1 : index
    %1 = memref.load %arg1[%c1] : memref<3xf32, #tpu.memory_space<smem>>
    %c2 = arith.constant 2 : index
    %2 = memref.load %arg1[%c2] : memref<3xf32, #tpu.memory_space<smem>>
    %c0_0 = arith.constant 0 : index
    %c0_1 = arith.constant 0 : index
    %3 = vector.load %arg2[%c0_0, %c0_1] : memref<2x128xf32, #tpu.memory_space<vmem>>, vector<1x128xf32>
    %4 = vector.broadcast %0 : f32 to vector<1x128xf32>
    %5 = arith.mulf %3, %4 : vector<1x128xf32>
    %c1_2 = arith.constant 1 : index
    %c0_3 = arith.constant 0 : index
    %6 = vector.load %arg2[%c1_2, %c0_3] : memref<2x128xf32, #tpu.memory_space<vmem>>, vector<1x128xf32>
    %7 = vector.broadcast %1 : f32 to vector<1x128xf32>
    %8 = arith.mulf %6, %7 : vector<1x128xf32>
    %9 = arith.addf %5, %8 : vector<1x128xf32>
    %10 = vector.broadcast %2 : f32 to vector<1x128xf32>
    %11 = arith.addf %9, %10 : vector<1x128xf32>
    %c0_4 = arith.constant 0 : index
    %c0_5 = arith.constant 0 : index
    %12 = vector.load %arg3[%c0_4, %c0_5] : memref<1x128xf32, #tpu.memory_space<vmem>>, vector<1x128xf32>
    tpu.vector_store %arg3[%c0_4, %c0_5], %11 {strides = array<i32>} : memref<1x128xf32, #tpu.memory_space<vmem>>, vector<1x128xf32>,
    return
  }
  func.func @transform_0(%arg0: i32) -> i32 {
    %c0_i32 = arith.constant 0 : i32
    %c0_i32_0 = arith.constant 0 : i32
    return %c0_i32 : i32
  }
  func.func @transform_1(%arg0: i32) -> (i32, i32) {
    %c0_i32 = arith.constant 0 : i32
    %c0_i32_0 = arith.constant 0 : i32
    return %c0_i32, %arg0 : i32, i32
  }
  func.func @transform_2(%arg0: i32) -> (i32, i32) {
    %c0_i32 = arith.constant 0 : i32
    %c0_i32_0 = arith.constant 0 : i32
    return %c0_i32, %arg0 : i32, i32
  }
}

</mosaic_0001>

<llo_original>
// kernel: tpu_custom_call.1
$region0: #{tpu_custom_call.1}
  #allocation0 [shape = 'u32[]', space=smem, size = 0x4, offset = 0x4, fixed_abs, tag = 'smem constant byte address 0x4 - core index']
  #allocation1 [shape = 'u32[144,128]{1,0:T(1,128)}', space=vmem, size = 0x12000, scoped, tag = 'internal scratch']
  %s0 = inlined_call_operand.hbm [shape: f32[3], index: 0, kind: input, shape index: {}]
  %s1 = inlined_call_operand.vmem [shape: f32[2,128], index: 1, kind: input, shape index: {}]
  %s2 = inlined_call_operand.hbm [shape: f32[1,128], index: 2, kind: output, shape index: {}]
  %s3 = sld [smem:[#allocation0]]
  $region22: #{tpu_custom_call.1} parent=0
    _
  %s5 = ssub.s32 1, %s3
  %s6 = scalar_select 0, %s5, %s3
  $region1: #{tpu_custom_call.1} parent=0
    #allocation2 [shape = 'u8[512]{0}', space=smem, size = 0x200, scoped, tag = 'input window, operand 0, single buffered']
    #allocation3 [shape = 's32[1]{0}', space=sflag, size = 0x4, scoped, tag = 'scoped memory for tpu_custom_call.1']
    #allocation4 [shape = 's32[1]{0}', space=sflag, size = 0x4, scoped, tag = 'scoped memory for tpu_custom_call.1']
    #allocation5 [shape = 'u8[512]{0}', space=vmem, size = 0x400, scoped, tag = 'output window, operand 0, single buffered']
    %7 = vsyncpa [#allocation4], 0
    %8 = vsyncpa [#allocation3], 0
    // Predicated region
    $region2: #{tpu_custom_call.1} parent=1 // pred_check
      _
    $region3: #{tpu_custom_call.1} parent=1 // pred_check_branch
      %10 = sbr.rel (0) target = $region5
    $region4: #{tpu_custom_call.1} parent=1 // pred_region
      %s12 = ssub.s32 16, 16
      %13 = vsyncadd [#allocation4], %s12
      %16 = dma.hbm_to_smem %s0, 16, [#allocation2], [#allocation4]
    $region5: #{tpu_custom_call.1} parent=1 // pred_fallthru
      _
    // Predicated region
    $region6: #{tpu_custom_call.1} parent=1 // pred_check
      _
    $region7: #{tpu_custom_call.1} parent=1 // pred_check_branch
      %18 = sbr.rel (0) target = $region9
    $region8: #{tpu_custom_call.1} parent=1 // pred_region
      _
    $region9: #{tpu_custom_call.1} parent=1 // pred_fallthru
      _
    // Predicated region
    $region10: #{tpu_custom_call.1} parent=1 // pred_check
      _
    $region11: #{tpu_custom_call.1} parent=1 // pred_check_branch
      %20 = sbr.rel (0) target = $region13
    $region12: #{tpu_custom_call.1} parent=1 // pred_region
      %21 = dma.done [#allocation4], 16
    $region13: #{tpu_custom_call.1} parent=1 // pred_fallthru
      _
    %22 = sfence
    %s23 = sld [smem:[#allocation2]]
    %s24 = sld [smem:[#allocation2 + $0x1]]
    %s25 = sld [smem:[#allocation2 + $0x2]]
    %v26 = vld [vmem:[%s1] sm:$0x1]
    %v27 = vstv %s23
    %v28 = vmul.f32 %v26, %v27
    %v29 = vld [vmem:[%s1 + $0x1] sm:$0x1]
    %v30 = vstv %s24
    %v31 = vmul.f32 %v29, %v30
    %v32 = vadd.f32 %v28, %v31
    %v33 = vstv %s25
    %v34 = vadd.f32 %v32, %v33
    %35 = vst [vmem:[#allocation5] sm:$0x1] %v34
    // Predicated region
    $region14: #{tpu_custom_call.1} parent=1 // pred_check
      _
    $region15: #{tpu_custom_call.1} parent=1 // pred_check_branch
      %37 = sbr.rel (0) target = $region17
    $region16: #{tpu_custom_call.1} parent=1 // pred_region
      %s39 = ssub.s32 16, 16
      %40 = vsyncadd [#allocation3], %s39
      %s42 = sshll.u32 [#allocation5], 4
      %s43 = int_to_ptr.vmem [resolvable:$true] %s42
      %45 = dma.vmem_to_hbm [thread:$0]  %s43, 16, %s2, [#allocation3]
    $region17: #{tpu_custom_call.1} parent=1 // pred_fallthru
      _
    // Predicated region
    $region18: #{tpu_custom_call.1} parent=1 // pred_check
      _
    $region19: #{tpu_custom_call.1} parent=1 // pred_check_branch
      %47 = sbr.rel (0) target = $region21
    $region20: #{tpu_custom_call.1} parent=1 // pred_region
      %48 = dma.done [#allocation3], 16
    $region21: #{tpu_custom_call.1} parent=1 // pred_fallthru
      _
    %49 = vsyncpa [#allocation3], 1
    %50 = vsyncpa [#allocation4], 1

</llo_original>
